<compile_context>
chip_gen: v7x
topology: tpu7x:2x2x1
jax: 0.10.0
libtpu: 0.0.40
codegen_flags: <defaults>
</compile_context>

<pallas_src>
import jax
import jax.numpy as jnp
from jax import lax
from jax.experimental import pallas as pl
from jax.experimental.pallas import tpu as pltpu


def _se_kernel(x_ref, x1_ref, w1_ref, w2t_ref, o_ref):
    # x_ref : (tb, C, L)   x1_ref : (tb, C, L1)   -- NCL, tiled on batch only.
    # w1_ref: (H, C) f32   w2t_ref: (H, C) f32    -- w2 pre-transposed in wrapper.
    # o_ref : (tb, C, L)

    # AdaptiveAvgPool1d(1): mean over the length (lane) axis, fp32 accumulation.
    y = jnp.mean(x_ref[...], axis=-1, dtype=jnp.float32)     # (tb, C)
    y1 = jnp.mean(x1_ref[...], axis=-1, dtype=jnp.float32)   # (tb, C)
    tb = y.shape[0]

    # Shared fc applied to both pooled vectors in one pass: stack -> 2 matmuls.
    yy = jnp.concatenate([y, y1], axis=0)                    # (2*tb, C)

    # (2tb, C) @ (H, C)^T -> (2tb, H)   [contract C with C]
    h = lax.dot_general(yy, w1_ref[...], (((1,), (1,)), ((), ())),
                        preferred_element_type=jnp.float32)
    h = jnp.maximum(h, 0.0)                                   # ReLU
    # (2tb, H) @ (H, C)  -> (2tb, C)    [w2 pre-transposed, lane-dense on C]
    z = lax.dot_general(h, w2t_ref[...], (((1,), (0,)), ((), ())),
                        preferred_element_type=jnp.float32)

    v = z[:tb] + z[tb:]                                       # (tb, C)
    # sigmoid(v) = 0.5*(tanh(v/2)+1): keeps the transcendental on the EUP slot.
    s = 0.5 * (jnp.tanh(0.5 * v) + 1.0)                       # (tb, C), fp32

    # Re-read the resident VMEM tile and scale in the native dtype, broadcasting
    # the per-(b, c) scale across the length (lane) axis.
    o_ref[...] = (x_ref[...] * s[:, :, None].astype(o_ref.dtype)).astype(o_ref.dtype)


def _vmem_budget():
    """(per-tile budget, vmem_limit_bytes) sized to the running TPU generation."""
    cap = None
    try:
        info = pltpu.get_tpu_info()
        for name in ("vmem_capacity_bytes", "vmem_size_bytes", "vmem_bytes"):
            val = getattr(info, name, None)
            if val:
                cap = int(val)
                break
    except Exception:
        cap = None
    if cap is not None and cap >= 100 * 1024 * 1024:
        # 128-MiB parts (v5e / v6e): big tiles amortize per-grid-step overhead.
        return 72 * 1024 * 1024, 104 * 1024 * 1024
    # 64-MiB parts (v7x per-TC) or unknown: stay well under the physical ceiling.
    return 24 * 1024 * 1024, 48 * 1024 * 1024


def _pick_block_b(b, l, l1, c, hdim, itemsize, budget_bytes):
    """Largest batch tile whose pipelined footprint fits the VMEM budget."""
    fixed = 2 * 2 * hdim * c * 4                    # double-buffered f32 weight tiles
    per_row = 2 * c * (2 * l + l1) * itemsize       # double-buffered x, x1, out
    per_row += c * (l + l1) * 4                     # f32 upcast headroom for both means
    per_row += (6 * c + 4 * hdim) * 4               # pooled / FC / sigmoid f32 temps
    avail = max(budget_bytes - fixed, per_row)
    return int(max(1, min(b, avail // per_row)))


def _choose_grid_block(b, tb_max):
    """Batch tile giving >=2 grid steps (cross-step pipelining) and an even
    step count (balanced across v7x's two TensorCores), within the VMEM cap."""
    if b <= 1:
        return 1
    steps = pl.cdiv(b, tb_max)
    steps = max(2, steps)        # keep the input/compute/output pipeline alive
    steps += steps % 2           # even -> both v7x TensorCores stay busy
    steps = min(steps, b)
    return int(pl.cdiv(b, steps))


def se_layer(x, x1, w1, w2, *, block_b=None):
    """SELayer forward.

    x : (B, C, L), x1 : (B, C, L1)  -- NCL layout, same as the PyTorch module.
    w1: (H, C), w2: (C, H)          -- PyTorch nn.Linear (out_features, in_features).
    Returns (B, C, L) in x.dtype.
    """
    b, c, l = x.shape
    b1, c1, l1 = x1.shape
    assert (b, c) == (b1, c1), "y + y1 requires matching (batch, channel)"
    hdim = w1.shape[0]
    assert w1.shape == (hdim, c) and w2.shape == (c, hdim)

    # Tiny one-time weight prep: f32 + transpose so both MXU operands are
    # lane-dense on C and no per-grid-step convert happens inside the kernel.
    w1_f = w1.astype(jnp.float32)                    # (H, C)
    w2t_f = jnp.transpose(w2).astype(jnp.float32)    # (H, C)

    budget_bytes, vmem_limit = _vmem_budget()
    itemsize = x.dtype.itemsize
    tb_max = _pick_block_b(b, l, l1, c, hdim, itemsize, budget_bytes)
    if block_b is None:
        block_b = _choose_grid_block(b, tb_max)
    block_b = int(max(1, min(block_b, b)))
    grid = (pl.cdiv(b, block_b),)

    cost = pl.CostEstimate(
        flops=8 * b * c * hdim + b * c * (2 * l + l1),
        transcendentals=b * c,
        bytes_accessed=(2 * x.size + x1.size) * itemsize
        + (w1_f.size + w2t_f.size) * 4,
    )

    return pl.pallas_call(
        _se_kernel,
        out_shape=jax.ShapeDtypeStruct((b, c, l), x.dtype),
        grid=grid,
        in_specs=[
            pl.BlockSpec((block_b, c, l), lambda i: (i, 0, 0)),
            pl.BlockSpec((block_b, c, l1), lambda i: (i, 0, 0)),
            pl.BlockSpec((hdim, c), lambda i: (0, 0)),
            pl.BlockSpec((hdim, c), lambda i: (0, 0)),
        ],
        out_specs=pl.BlockSpec((block_b, c, l), lambda i: (i, 0, 0)),
        compiler_params=pltpu.CompilerParams(
            dimension_semantics=("parallel",),   # batch tiles split across TCs
            vmem_limit_bytes=vmem_limit,
        ),
        cost_estimate=cost,
    )(x, x1, w1_f, w2t_f)


def se_layer_ref(x, x1, w1, w2):
    """Pure-JAX reference mirroring the PyTorch forward."""
    y = jnp.mean(x, axis=-1)
    y1 = jnp.mean(x1, axis=-1)

    def fc(v):
        return jnp.maximum(v @ w1.T, 0.0) @ w2.T

    s = jax.nn.sigmoid(fc(y) + fc(y1))
    return x * s[:, :, None]


if __name__ == "__main__":
    B, C, L, L1 = 4, 128, 16, 24
    reduction = 8
    H = C // reduction

    key = jax.random.PRNGKey(0)
    kx, kx1, kw1, kw2 = jax.random.split(key, 4)

    x = jax.random.normal(kx, (B, C, L), dtype=jnp.float32)
    x1 = jax.random.normal(kx1, (B, C, L1), dtype=jnp.float32)
    # PyTorch nn.Linear layout (out_features, in_features), no bias.
    w1 = jax.random.normal(kw1, (H, C), dtype=jnp.float32) * 0.1
    w2 = jax.random.normal(kw2, (C, H), dtype=jnp.float32) * 0.1

    # Auto tile selection -> block_b=2, grid=(2,): exercises the batch pipeline
    # and the even-grid split across TensorCores.
    out = se_layer(x, x1, w1, w2)
    out = jax.block_until_ready(out)

    ref = se_layer_ref(x, x1, w1, w2)
    assert out.shape == (B, C, L)
    assert jnp.allclose(out, ref, atol=1e-5, rtol=1e-5), "mismatch vs reference"

    print("KERNEL_OK")
</pallas_src>

<mosaic_0001>
module attributes {stable_mosaic.version = 11 : i64} {
  func.func @_se_kernel(%arg0: i32, %arg1: memref<2x128x16xf32, #tpu.memory_space<vmem>>, %arg2: memref<2x128x24xf32, #tpu.memory_space<vmem>>, %arg3: memref<16x128xf32, #tpu.memory_space<vmem>>, %arg4: memref<16x128xf32, #tpu.memory_space<vmem>>, %arg5: memref<2x128x16xf32, #tpu.memory_space<vmem>>) attributes {dimension_semantics = [#tpu.dimension_semantics<parallel>], iteration_bounds = array<i64: 2>, scalar_prefetch = 0 : i64, scratch_operands = 0 : i64, tpu.core_type = #tpu.core_type<tc>, window_params = [{transform_indices = @transform_0, window_bounds = array<i64: 2, 128, 16>}, {transform_indices = @transform_1, window_bounds = array<i64: 2, 128, 24>}, {pipeline_mode = #tpu.pipeline_mode<synchronous>, transform_indices = @transform_2, window_bounds = array<i64: 16, 128>}, {pipeline_mode = #tpu.pipeline_mode<synchronous>, transform_indices = @transform_3, window_bounds = array<i64: 16, 128>}, {transform_indices = @transform_4, window_bounds = array<i64: 2, 128, 16>}]} {
    %c0 = arith.constant 0 : index
    %c0_0 = arith.constant 0 : index
    %c0_1 = arith.constant 0 : index
    %0 = vector.load %arg1[%c0, %c0_0, %c0_1] : memref<2x128x16xf32, #tpu.memory_space<vmem>>, vector<2x128x16xf32>
    %cst = arith.constant dense<0.000000e+00> : vector<2x128xf32>
    %1 = vector.multi_reduction <add>, %0, %cst [2] : vector<2x128x16xf32> to vector<2x128xf32>
    %cst_2 = arith.constant 1.600000e+01 : f32
    %2 = vector.broadcast %cst_2 : f32 to vector<2x128xf32>
    %3 = arith.divf %1, %2 : vector<2x128xf32>
    %c0_3 = arith.constant 0 : index
    %c0_4 = arith.constant 0 : index
    %c0_5 = arith.constant 0 : index
    %4 = vector.load %arg2[%c0_3, %c0_4, %c0_5] : memref<2x128x24xf32, #tpu.memory_space<vmem>>, vector<2x128x24xf32>
    %cst_6 = arith.constant dense<0.000000e+00> : vector<2x128xf32>
    %5 = vector.multi_reduction <add>, %4, %cst_6 [2] : vector<2x128x24xf32> to vector<2x128xf32>
    %cst_7 = arith.constant 2.400000e+01 : f32
    %6 = vector.broadcast %cst_7 : f32 to vector<2x128xf32>
    %7 = arith.divf %5, %6 : vector<2x128xf32>
    %8 = tpu.concatenate %3, %7 in 0 : vector<2x128xf32>, vector<2x128xf32> -> vector<4x128xf32>
    %c0_8 = arith.constant 0 : index
    %c0_9 = arith.constant 0 : index
    %9 = vector.load %arg3[%c0_8, %c0_9] : memref<16x128xf32, #tpu.memory_space<vmem>>, vector<16x128xf32>
    %cst_10 = arith.constant dense<0.000000e+00> : vector<4x16xf32>
    %10 = tpu.matmul %8, %9, %cst_10 {dimension_numbers = #tpu.dot_dimension_numbers<[1], [1], [0], [0], [0, 0, 1, 0], [], []>} : vector<4x128xf32>, vector<16x128xf32>, vector<4x16xf32> -> vector<4x16xf32>
    %cst_11 = arith.constant 0.000000e+00 : f32
    %11 = vector.broadcast %cst_11 : f32 to vector<4x16xf32>
    %12 = arith.maximumf %10, %11 : vector<4x16xf32>
    %c0_12 = arith.constant 0 : index
    %c0_13 = arith.constant 0 : index
    %13 = vector.load %arg4[%c0_12, %c0_13] : memref<16x128xf32, #tpu.memory_space<vmem>>, vector<16x128xf32>
    %cst_14 = arith.constant dense<0.000000e+00> : vector<4x128xf32>
    %14 = tpu.matmul %12, %13, %cst_14 {dimension_numbers = #tpu.dot_dimension_numbers<[1], [0], [0], [1], [0, 0, 1, 1], [], []>} : vector<4x16xf32>, vector<16x128xf32>, vector<4x128xf32> -> vector<4x128xf32>
    %15 = vector.extract_strided_slice %14 {offsets = [0, 0], sizes = [2, 128], strides = [1, 1]} : vector<4x128xf32> to vector<2x128xf32>
    %16 = vector.extract_strided_slice %14 {offsets = [2, 0], sizes = [2, 128], strides = [1, 1]} : vector<4x128xf32> to vector<2x128xf32>
    %17 = arith.addf %15, %16 : vector<2x128xf32>
    %cst_15 = arith.constant 5.000000e-01 : f32
    %18 = vector.broadcast %cst_15 : f32 to vector<2x128xf32>
    %19 = arith.mulf %18, %17 : vector<2x128xf32>
    %20 = math.tanh %19 : vector<2x128xf32>
    %cst_16 = arith.constant 1.000000e+00 : f32
    %21 = vector.broadcast %cst_16 : f32 to vector<2x128xf32>
    %22 = arith.addf %20, %21 : vector<2x128xf32>
    %cst_17 = arith.constant 5.000000e-01 : f32
    %23 = vector.broadcast %cst_17 : f32 to vector<2x128xf32>
    %24 = arith.mulf %23, %22 : vector<2x128xf32>
    %c0_18 = arith.constant 0 : index
    %c0_19 = arith.constant 0 : index
    %c0_20 = arith.constant 0 : index
    %25 = vector.load %arg1[%c0_18, %c0_19, %c0_20] : memref<2x128x16xf32, #tpu.memory_space<vmem>>, vector<2x128x16xf32>
    %26 = vector.shape_cast %24 : vector<2x128xf32> to vector<2x128x1xf32>
    %27 = vector.broadcast %26 : vector<2x128x1xf32> to vector<2x128x16xf32>
    %28 = arith.mulf %25, %27 : vector<2x128x16xf32>
    %c0_21 = arith.constant 0 : index
    %c0_22 = arith.constant 0 : index
    %c0_23 = arith.constant 0 : index
    %29 = vector.load %arg5[%c0_21, %c0_22, %c0_23] : memref<2x128x16xf32, #tpu.memory_space<vmem>>, vector<2x128x16xf32>
    tpu.vector_store %arg5[%c0_21, %c0_22, %c0_23], %28 {strides = array<i32>} : memref<2x128x16xf32, #tpu.memory_space<vmem>>, vector<2x128x16xf32>,
    return
  }
  func.func @transform_0(%arg0: i32) -> (i32, i32, i32) {
    %c0_i32 = arith.constant 0 : i32
    %c0_i32_0 = arith.constant 0 : i32
    %c0_i32_1 = arith.constant 0 : i32
    return %arg0, %c0_i32, %c0_i32_0 : i32, i32, i32
  }
  func.func @transform_1(%arg0: i32) -> (i32, i32, i32) {
    %c0_i32 = arith.constant 0 : i32
    %c0_i32_0 = arith.constant 0 : i32
    %c0_i32_1 = arith.constant 0 : i32
    return %arg0, %c0_i32, %c0_i32_0 : i32, i32, i32
  }
  func.func @transform_2(%arg0: i32) -> (i32, i32) {
    %c0_i32 = arith.constant 0 : i32
    %c0_i32_0 = arith.constant 0 : i32
    %c0_i32_1 = arith.constant 0 : i32
    return %c0_i32, %c0_i32_0 : i32, i32
  }
  func.func @transform_3(%arg0: i32) -> (i32, i32) {
    %c0_i32 = arith.constant 0 : i32
    %c0_i32_0 = arith.constant 0 : i32
    %c0_i32_1 = arith.constant 0 : i32
    return %c0_i32, %c0_i32_0 : i32, i32
  }
  func.func @transform_4(%arg0: i32) -> (i32, i32, i32) {
    %c0_i32 = arith.constant 0 : i32
    %c0_i32_0 = arith.constant 0 : i32
    %c0_i32_1 = arith.constant 0 : i32
    return %arg0, %c0_i32, %c0_i32_0 : i32, i32, i32
  }
}

</mosaic_0001>

<llo_original>
// kernel: tpu_custom_call.1
$region0: #{tpu_custom_call.1}
  #allocation0 [shape = 'u32[]', space=smem, size = 0x4, offset = 0x4, fixed_abs, tag = 'smem constant byte address 0x4 - core index']
  #allocation1 [shape = 'u32[144,128]{1,0:T(1,128)}', space=vmem, size = 0x12000, scoped, tag = 'internal scratch']
  %s0 = inlined_call_operand.vmem [shape: f32[4,128,16], index: 0, kind: input, shape index: {}]
  %s1 = inlined_call_operand.vmem [shape: f32[4,128,24], index: 1, kind: input, shape index: {}]
  %s2 = inlined_call_operand.vmem [shape: f32[16,128], index: 2, kind: input, shape index: {}]
  %s3 = inlined_call_operand.vmem [shape: f32[16,128], index: 3, kind: input, shape index: {}]
  %s4 = inlined_call_operand.vmem [shape: f32[4,128,16], index: 4, kind: output, shape index: {}]
  %s5 = sld [smem:[#allocation0]]
  $region49: #{tpu_custom_call.1} parent=0
    _
  %s7 = ssub.s32 1, %s5
  %s8 = scalar_select 0, %s7, %s5
  loop: start=0, step=1, limit=4
  $region2: #{tpu_custom_call.1} parent=0 // loop_pre_header
    _
  $region3: #{tpu_custom_call.1} parent=0 // loop_header
    %s10 = sphi 0, %s14
    %p11 = scmp.ge.s32.totalorder %s10, 4
    %s20 = sphi 0, %s22
    %s23 = sphi 0, %s20
    %s24 = sphi 0, %s23
    %s40 = sphi 0, %s24
    %s46 = sphi 0, %s48
    %s49 = sphi 0, %s46
    %s50 = sphi 0, %s49
    %s66 = sphi 0, %s50
    %s70 = sphi 0, %s70
    %s72 = sphi 0, %s70
    %s73 = sphi 0, %s72
    %s87 = sphi 0, %s73
    %s91 = sphi 0, %s91
    %s93 = sphi 0, %s91
    %s94 = sphi 0, %s93
    %s108 = sphi 0, %s94
    %s114 = sphi 0, %s116
    %s117 = sphi 0, %s114
    %s118 = sphi 0, %s117
    %s134 = sphi 0, %s118
  $region4: #{tpu_custom_call.1} parent=0 // loop_header_branch
    %13 = sbr.rel (%p11) target = $region8
  $region5: #{tpu_custom_call.1} parent=0 // loop_body
    %s15 = ssub.s32 %s10, 1
    %s16 = ssub.s32 %s10, 2
    %s17 = sadd.s32 %s10, 1
    %s18 = ssub.s32 %s10, %s17
    %p19 = scmp.eq.s32.totalorder %s18, 0
    %s21 = sadd.s32 %s20, 1
    %s22 = scalar_select %p19, %s20, %s21
    %p25 = pneg %p19
    %p26 = scmp.eq.s32.totalorder %s10, 1
    %p27 = por %p25, %p26
    %p28 = scmp.ne.s32.totalorder %s20, %s23
    %p29 = scmp.eq.s32.totalorder %s10, 0
    %p30 = por %p28, %p29
    %p31 = scmp.ne.s32.totalorder %s20, %s23
    %p32 = scmp.eq.s32.totalorder %s15, 1
    %p33 = por %p31, %p32
    %p34 = scmp.ne.s32.totalorder %s23, %s24
    %p35 = scmp.eq.s32.totalorder %s15, 0
    %p36 = por %p34, %p35
    %p37 = scmp.ne.s32.totalorder %s23, %s24
    %p38 = scmp.eq.s32.totalorder %s16, 1
    %p39 = por %p37, %p38
    %p41 = scmp.ne.s32.totalorder %s24, %s40
    %p42 = scmp.eq.s32.totalorder %s16, 0
    %p43 = por %p41, %p42
    %s44 = ssub.s32 %s10, %s17
    %p45 = scmp.eq.s32.totalorder %s44, 0
    %s47 = sadd.s32 %s46, 1
    %s48 = scalar_select %p45, %s46, %s47
    %p51 = pneg %p45
    %p52 = scmp.eq.s32.totalorder %s10, 1
    %p53 = por %p51, %p52
    %p54 = scmp.ne.s32.totalorder %s46, %s49
    %p55 = scmp.eq.s32.totalorder %s10, 0
    %p56 = por %p54, %p55
    %p57 = scmp.ne.s32.totalorder %s46, %s49
    %p58 = scmp.eq.s32.totalorder %s15, 1
    %p59 = por %p57, %p58
    %p60 = scmp.ne.s32.totalorder %s49, %s50
    %p61 = scmp.eq.s32.totalorder %s15, 0
    %p62 = por %p60, %p61
    %p63 = scmp.ne.s32.totalorder %s49, %s50
    %p64 = scmp.eq.s32.totalorder %s16, 1
    %p65 = por %p63, %p64
    %p67 = scmp.ne.s32.totalorder %s50, %s66
    %p68 = scmp.eq.s32.totalorder %s16, 0
    %p69 = por %p67, %p68
    %s71 = sadd.s32 %s70, 1
    %p74 = scmp.eq.s32.totalorder %s10, 1
    %p75 = scmp.ne.s32.totalorder %s70, %s72
    %p76 = scmp.eq.s32.totalorder %s10, 0
    %p77 = por %p75, %p76
    %p78 = scmp.ne.s32.totalorder %s70, %s72
    %p79 = scmp.eq.s32.totalorder %s15, 1
    %p80 = por %p78, %p79
    %p81 = scmp.ne.s32.totalorder %s72, %s73
    %p82 = scmp.eq.s32.totalorder %s15, 0
    %p83 = por %p81, %p82
    %p84 = scmp.ne.s32.totalorder %s72, %s73
    %p85 = scmp.eq.s32.totalorder %s16, 1
    %p86 = por %p84, %p85
    %p88 = scmp.ne.s32.totalorder %s73, %s87
    %p89 = scmp.eq.s32.totalorder %s16, 0
    %p90 = por %p88, %p89
    %s92 = sadd.s32 %s91, 1
    %p95 = scmp.eq.s32.totalorder %s10, 1
    %p96 = scmp.ne.s32.totalorder %s91, %s93
    %p97 = scmp.eq.s32.totalorder %s10, 0
    %p98 = por %p96, %p97
    %p99 = scmp.ne.s32.totalorder %s91, %s93
    %p100 = scmp.eq.s32.totalorder %s15, 1
    %p101 = por %p99, %p100
    %p102 = scmp.ne.s32.totalorder %s93, %s94
    %p103 = scmp.eq.s32.totalorder %s15, 0
    %p104 = por %p102, %p103
    %p105 = scmp.ne.s32.totalorder %s93, %s94
    %p106 = scmp.eq.s32.totalorder %s16, 1
    %p107 = por %p105, %p106
    %p109 = scmp.ne.s32.totalorder %s94, %s108
    %p110 = scmp.eq.s32.totalorder %s16, 0
    %p111 = por %p109, %p110
    %s112 = ssub.s32 %s10, %s17
    %p113 = scmp.eq.s32.totalorder %s112, 0
    %s115 = sadd.s32 %s114, 1
    %s116 = scalar_select %p113, %s114, %s115
    %p119 = pneg %p113
    %p120 = scmp.eq.s32.totalorder %s10, 1
    %p121 = por %p119, %p120
    %p122 = scmp.ne.s32.totalorder %s114, %s117
    %p123 = scmp.eq.s32.totalorder %s10, 0
    %p124 = por %p122, %p123
    %p125 = scmp.ne.s32.totalorder %s114, %s117
    %p126 = scmp.eq.s32.totalorder %s15, 1
    %p127 = por %p125, %p126
    %p128 = scmp.ne.s32.totalorder %s117, %s118
    %p129 = scmp.eq.s32.totalorder %s15, 0
    %p130 = por %p128, %p129
    %p131 = scmp.ne.s32.totalorder %s117, %s118
    %p132 = scmp.eq.s32.totalorder %s16, 1
    %p133 = por %p131, %p132
    %p135 = scmp.ne.s32.totalorder %s118, %s134
    %p136 = scmp.eq.s32.totalorder %s16, 0
    %p137 = por %p135, %p136
    %p138 = scmp.le.s32.totalorder 1, %s10
    %p139 = scmp.lt.s32.totalorder %s10, 3
    %p140 = pnand %p138, %p139
    %p141 = pneg %p140
    // Predicated region
    $region9: #{tpu_custom_call.1} parent=5 // pred_check
      _
    $region10: #{tpu_custom_call.1} parent=5 // pred_check_branch
      %143 = sbr.rel (%p140) target = $region12
    $region11: #{tpu_custom_call.1} parent=5 // pred_region
      %s144 = ssub.s32 %s10, 1
      // Predicated region
      $region13: #{tpu_custom_call.1} parent=11 // pred_check
        %p145 = pneg %p83
      $region14: #{tpu_custom_call.1} parent=11 // pred_check_branch
        %147 = sbr.rel (%p145) target = $region16
      $region15: #{tpu_custom_call.1} parent=11 // pred_region
        _
      $region16: #{tpu_custom_call.1} parent=11 // pred_fallthru
        _
      // Predicated region
      $region17: #{tpu_custom_call.1} parent=11 // pred_check
        %p148 = pneg %p104
      $region18: #{tpu_custom_call.1} parent=11 // pred_check_branch
        %150 = sbr.rel (%p148) target = $region20
      $region19: #{tpu_custom_call.1} parent=11 // pred_region
        _
      $region20: #{tpu_custom_call.1} parent=11 // pred_fallthru
        _
    $region12: #{tpu_custom_call.1} parent=5 // pred_fallthru
      _
    %p151 = scmp.lt.s32.totalorder %s10, 2
    // Predicated region
    $region21: #{tpu_custom_call.1} parent=5 // pred_check
      %p152 = pneg %p151
    $region22: #{tpu_custom_call.1} parent=5 // pred_check_branch
      %154 = sbr.rel (%p152) target = $region24
    $region23: #{tpu_custom_call.1} parent=5 // pred_region
      // Predicated region
      $region25: #{tpu_custom_call.1} parent=23 // pred_check
        %p155 = pneg %p30
      $region26: #{tpu_custom_call.1} parent=23 // pred_check_branch
        %157 = sbr.rel (%p155) target = $region28
      $region27: #{tpu_custom_call.1} parent=23 // pred_region
        %s158 = smul.u32 2, %s10
        %p159 = scmp.lt.s32.totalorder %s158, 3
        %s160 = scalar_select %p159, %s158, 3
        %s161 = smul.addr %s160, 16
        %s162 = smul.addr %s161, 8
        %s163 = scalar_lea.vmem %s0, %s162
        %s164 = smul.u32 2, %s10
      $region28: #{tpu_custom_call.1} parent=23 // pred_fallthru
        _
      // Predicated region
      $region29: #{tpu_custom_call.1} parent=23 // pred_check
        %p165 = pneg %p56
      $region30: #{tpu_custom_call.1} parent=23 // pred_check_branch
        %167 = sbr.rel (%p165) target = $region32
      $region31: #{tpu_custom_call.1} parent=23 // pred_region
        %s168 = smul.u32 2, %s10
        %p169 = scmp.lt.s32.totalorder %s168, 3
        %s170 = scalar_select %p169, %s168, 3
        %s171 = smul.addr %s170, 16
        %s172 = smul.addr %s171, 8
        %s173 = scalar_lea.vmem %s1, %s172
        %s174 = smul.u32 2, %s10
      $region32: #{tpu_custom_call.1} parent=23 // pred_fallthru
        _
    $region24: #{tpu_custom_call.1} parent=5 // pred_fallthru
      _
    %p175 = scmp.le.s32.totalorder 1, %s10
    %p176 = scmp.lt.s32.totalorder %s10, 3
    %p177 = pnand %p175, %p176
    %p178 = pneg %p177
    // Predicated region
    $region33: #{tpu_custom_call.1} parent=5 // pred_check
      _
    $region34: #{tpu_custom_call.1} parent=5 // pred_check_branch
      %180 = sbr.rel (%p177) target = $region36
    $region35: #{tpu_custom_call.1} parent=5 // pred_region
      %s181 = ssub.s32 %s10, 1
      %s182 = smul.u32 2, %s15
      %p183 = scmp.lt.s32.totalorder %s182, 3
      %s184 = scalar_select %p183, %s182, 3
      %s185 = smul.addr %s184, 16
      %s186 = smul.addr %s185, 8
      %s187 = scalar_lea.vmem %s0, %s186
      %p188 = pneg %p36
      %p189 = pneg %p33
      %s190 = smul.u32 2, %s15
      %p191 = scmp.lt.s32.totalorder %s190, 3
      %s192 = scalar_select %p191, %s190, 3
      %s193 = smul.addr %s192, 16
      %s194 = smul.addr %s193, 8
      %s195 = scalar_lea.vmem %s1, %s194
      %p196 = pneg %p62
      %p197 = pneg %p59
      %p198 = pneg %p83
      %p199 = pneg %p80
      %p200 = pneg %p104
      %p201 = pneg %p101
      %p202 = pneg %p130
      %p203 = pneg %p127
      %s204 = smul.u32 2, %s15
      %p205 = scmp.lt.s32.totalorder %s204, 3
      %s206 = scalar_select %p205, %s204, 3
      %s207 = smul.addr %s206, 16
      %s208 = smul.addr %s207, 8
      %s209 = scalar_lea.vmem %s4, %s208
      %s210 = smul.u32 2, %s15
      %p211 = scmp.lt.s32.totalorder %s210, 3
      %s212 = scalar_select %p211, %s210, 3
      %s213 = smul.addr %s212, 16
      %s214 = smul.addr %s213, 8
      %s215 = scalar_lea.vmem %s0, %s214
      %s216 = smul.u32 2, %s15
      %s217 = smul.u32 2, %s15
      %p218 = scmp.lt.s32.totalorder %s217, 3
      %s219 = scalar_select %p218, %s217, 3
      %s220 = smul.addr %s219, 16
      %s221 = smul.addr %s220, 8
      %s222 = scalar_lea.vmem %s1, %s221
      %s223 = smul.u32 2, %s15
      %s224 = smul.u32 2, %s15
      %p225 = scmp.lt.s32.totalorder %s224, 3
      %s226 = scalar_select %p225, %s224, 3
      %s227 = smul.addr %s226, 16
      %s228 = smul.addr %s227, 8
      %s229 = scalar_lea.vmem %s4, %s228
      %s230 = smul.u32 2, %s15
      %v231 = vld [vmem:[%s215] sm:$0xff]
      %v232 = vld [vmem:[%s215 + $0x8] sm:$0xff]
      %v233 = vld [vmem:[%s215 + $0x10] sm:$0xff]
      %v234 = vld [vmem:[%s215 + $0x18] sm:$0xff]
      %v235 = vld [vmem:[%s215 + $0x20] sm:$0xff]
      %v236 = vld [vmem:[%s215 + $0x28] sm:$0xff]
      %v237 = vld [vmem:[%s215 + $0x30] sm:$0xff]
      %v238 = vld [vmem:[%s215 + $0x38] sm:$0xff]
      %v239 = vld [vmem:[%s215 + $0x40] sm:$0xff]
      %v240 = vld [vmem:[%s215 + $0x48] sm:$0xff]
      %v241 = vld [vmem:[%s215 + $0x50] sm:$0xff]
      %v242 = vld [vmem:[%s215 + $0x58] sm:$0xff]
      %v243 = vld [vmem:[%s215 + $0x60] sm:$0xff]
      %v244 = vld [vmem:[%s215 + $0x68] sm:$0xff]
      %v245 = vld [vmem:[%s215 + $0x70] sm:$0xff]
      %v246 = vld [vmem:[%s215 + $0x78] sm:$0xff]
      %v247 = vld [vmem:[%s215 + $0x80] sm:$0xff]
      %v248 = vld [vmem:[%s215 + $0x88] sm:$0xff]
      %v249 = vld [vmem:[%s215 + $0x90] sm:$0xff]
      %v250 = vld [vmem:[%s215 + $0x98] sm:$0xff]
      %v251 = vld [vmem:[%s215 + $0xa0] sm:$0xff]
      %v252 = vld [vmem:[%s215 + $0xa8] sm:$0xff]
      %v253 = vld [vmem:[%s215 + $0xb0] sm:$0xff]
      %v254 = vld [vmem:[%s215 + $0xb8] sm:$0xff]
      %v255 = vld [vmem:[%s215 + $0xc0] sm:$0xff]
      %v256 = vld [vmem:[%s215 + $0xc8] sm:$0xff]
      %v257 = vld [vmem:[%s215 + $0xd0] sm:$0xff]
      %v258 = vld [vmem:[%s215 + $0xd8] sm:$0xff]
      %v259 = vld [vmem:[%s215 + $0xe0] sm:$0xff]
      %v260 = vld [vmem:[%s215 + $0xe8] sm:$0xff]
      %v261 = vld [vmem:[%s215 + $0xf0] sm:$0xff]
      %v262 = vld [vmem:[%s215 + $0xf8] sm:$0xff]
      %vm263 = vcmask 130048
      %v264 = vsel %vm263, %v231, 0.0
      %265 = vadd.xlane.f32.xlu0 %v264
      %v266 = vpop.xlane.xlu0 %265
      %v267 = vsel %vm263, %v232, 0.0
      %268 = vadd.xlane.f32.xlu0 %v267
      %v269 = vpop.xlane.xlu0 %268
      %v270 = vsel %vm263, %v233, 0.0
      %271 = vadd.xlane.f32.xlu0 %v270
      %v272 = vpop.xlane.xlu0 %271
      %v273 = vsel %vm263, %v234, 0.0
      %274 = vadd.xlane.f32.xlu0 %v273
      %v275 = vpop.xlane.xlu0 %274
      %v276 = vsel %vm263, %v235, 0.0
      %277 = vadd.xlane.f32.xlu0 %v276
      %v278 = vpop.xlane.xlu0 %277
      %v279 = vsel %vm263, %v236, 0.0
      %280 = vadd.xlane.f32.xlu0 %v279
      %v281 = vpop.xlane.xlu0 %280
      %v282 = vsel %vm263, %v237, 0.0
      %283 = vadd.xlane.f32.xlu0 %v282
      %v284 = vpop.xlane.xlu0 %283
      %v285 = vsel %vm263, %v238, 0.0
      %286 = vadd.xlane.f32.xlu0 %v285
      %v287 = vpop.xlane.xlu0 %286
      %v288 = vsel %vm263, %v239, 0.0
      %289 = vadd.xlane.f32.xlu0 %v288
      %v290 = vpop.xlane.xlu0 %289
      %v291 = vsel %vm263, %v240, 0.0
      %292 = vadd.xlane.f32.xlu0 %v291
      %v293 = vpop.xlane.xlu0 %292
      %v294 = vsel %vm263, %v241, 0.0
      %295 = vadd.xlane.f32.xlu0 %v294
      %v296 = vpop.xlane.xlu0 %295
      %v297 = vsel %vm263, %v242, 0.0
      %298 = vadd.xlane.f32.xlu0 %v297
      %v299 = vpop.xlane.xlu0 %298
      %v300 = vsel %vm263, %v243, 0.0
      %301 = vadd.xlane.f32.xlu0 %v300
      %v302 = vpop.xlane.xlu0 %301
      %v303 = vsel %vm263, %v244, 0.0
      %304 = vadd.xlane.f32.xlu0 %v303
      %v305 = vpop.xlane.xlu0 %304
      %v306 = vsel %vm263, %v245, 0.0
      %307 = vadd.xlane.f32.xlu0 %v306
      %v308 = vpop.xlane.xlu0 %307
      %v309 = vsel %vm263, %v246, 0.0
      %310 = vadd.xlane.f32.xlu0 %v309
      %v311 = vpop.xlane.xlu0 %310
      %v312 = vsel %vm263, %v247, 0.0
      %313 = vadd.xlane.f32.xlu0 %v312
      %v314 = vpop.xlane.xlu0 %313
      %v315 = vsel %vm263, %v248, 0.0
      %316 = vadd.xlane.f32.xlu0 %v315
      %v317 = vpop.xlane.xlu0 %316
      %v318 = vsel %vm263, %v249, 0.0
      %319 = vadd.xlane.f32.xlu0 %v318
      %v320 = vpop.xlane.xlu0 %319
      %v321 = vsel %vm263, %v250, 0.0
      %322 = vadd.xlane.f32.xlu0 %v321
      %v323 = vpop.xlane.xlu0 %322
      %v324 = vsel %vm263, %v251, 0.0
      %325 = vadd.xlane.f32.xlu0 %v324
      %v326 = vpop.xlane.xlu0 %325
      %v327 = vsel %vm263, %v252, 0.0
      %328 = vadd.xlane.f32.xlu0 %v327
      %v329 = vpop.xlane.xlu0 %328
      %v330 = vsel %vm263, %v253, 0.0
      %331 = vadd.xlane.f32.xlu0 %v330
      %v332 = vpop.xlane.xlu0 %331
      %v333 = vsel %vm263, %v254, 0.0
      %334 = vadd.xlane.f32.xlu0 %v333
      %v335 = vpop.xlane.xlu0 %334
      %v336 = vsel %vm263, %v255, 0.0
      %337 = vadd.xlane.f32.xlu0 %v336
      %v338 = vpop.xlane.xlu0 %337
      %v339 = vsel %vm263, %v256, 0.0
      %340 = vadd.xlane.f32.xlu0 %v339
      %v341 = vpop.xlane.xlu0 %340
      %v342 = vsel %vm263, %v257, 0.0
      %343 = vadd.xlane.f32.xlu0 %v342
      %v344 = vpop.xlane.xlu0 %343
      %v345 = vsel %vm263, %v258, 0.0
      %346 = vadd.xlane.f32.xlu0 %v345
      %v347 = vpop.xlane.xlu0 %346
      %v348 = vsel %vm263, %v259, 0.0
      %349 = vadd.xlane.f32.xlu0 %v348
      %v350 = vpop.xlane.xlu0 %349
      %v351 = vsel %vm263, %v260, 0.0
      %352 = vadd.xlane.f32.xlu0 %v351
      %v353 = vpop.xlane.xlu0 %352
      %v354 = vsel %vm263, %v261, 0.0
      %355 = vadd.xlane.f32.xlu0 %v354
      %v356 = vpop.xlane.xlu0 %355
      %v357 = vsel %vm263, %v262, 0.0
      %358 = vadd.xlane.f32.xlu0 %v357
      %v359 = vpop.xlane.xlu0 %358
      %v360 = vrcp.pop 16.0
      %v361 = vmul.f32 %v266, %v360
      %v362 = vmul.f32 %v269, %v360
      %v363 = vmul.f32 %v272, %v360
      %v364 = vmul.f32 %v275, %v360
      %v365 = vmul.f32 %v278, %v360
      %v366 = vmul.f32 %v281, %v360
      %v367 = vmul.f32 %v284, %v360
      %v368 = vmul.f32 %v287, %v360
      %v369 = vmul.f32 %v290, %v360
      %v370 = vmul.f32 %v293, %v360
      %v371 = vmul.f32 %v296, %v360
      %v372 = vmul.f32 %v299, %v360
      %v373 = vmul.f32 %v302, %v360
      %v374 = vmul.f32 %v305, %v360
      %v375 = vmul.f32 %v308, %v360
      %v376 = vmul.f32 %v311, %v360
      %v377 = vmul.f32 %v314, %v360
      %v378 = vmul.f32 %v317, %v360
      %v379 = vmul.f32 %v320, %v360
      %v380 = vmul.f32 %v323, %v360
      %v381 = vmul.f32 %v326, %v360
      %v382 = vmul.f32 %v329, %v360
      %v383 = vmul.f32 %v332, %v360
      %v384 = vmul.f32 %v335, %v360
      %v385 = vmul.f32 %v338, %v360
      %v386 = vmul.f32 %v341, %v360
      %v387 = vmul.f32 %v344, %v360
      %v388 = vmul.f32 %v347, %v360
      %v389 = vmul.f32 %v350, %v360
      %v390 = vmul.f32 %v353, %v360
      %v391 = vmul.f32 %v356, %v360
      %v392 = vmul.f32 %v359, %v360
      %v393 = vld [vmem:[%s222] sm:$0xff]
      %v394 = vld [vmem:[%s222 + $0x8] sm:$0xff]
      %v395 = vld [vmem:[%s222 + $0x10] sm:$0xff]
      %v396 = vld [vmem:[%s222 + $0x18] sm:$0xff]
      %v397 = vld [vmem:[%s222 + $0x20] sm:$0xff]
      %v398 = vld [vmem:[%s222 + $0x28] sm:$0xff]
      %v399 = vld [vmem:[%s222 + $0x30] sm:$0xff]
      %v400 = vld [vmem:[%s222 + $0x38] sm:$0xff]
      %v401 = vld [vmem:[%s222 + $0x40] sm:$0xff]
      %v402 = vld [vmem:[%s222 + $0x48] sm:$0xff]
      %v403 = vld [vmem:[%s222 + $0x50] sm:$0xff]
      %v404 = vld [vmem:[%s222 + $0x58] sm:$0xff]
      %v405 = vld [vmem:[%s222 + $0x60] sm:$0xff]
      %v406 = vld [vmem:[%s222 + $0x68] sm:$0xff]
      %v407 = vld [vmem:[%s222 + $0x70] sm:$0xff]
      %v408 = vld [vmem:[%s222 + $0x78] sm:$0xff]
      %v409 = vld [vmem:[%s222 + $0x80] sm:$0xff]
      %v410 = vld [vmem:[%s222 + $0x88] sm:$0xff]
      %v411 = vld [vmem:[%s222 + $0x90] sm:$0xff]
      %v412 = vld [vmem:[%s222 + $0x98] sm:$0xff]
      %v413 = vld [vmem:[%s222 + $0xa0] sm:$0xff]
      %v414 = vld [vmem:[%s222 + $0xa8] sm:$0xff]
      %v415 = vld [vmem:[%s222 + $0xb0] sm:$0xff]
      %v416 = vld [vmem:[%s222 + $0xb8] sm:$0xff]
      %v417 = vld [vmem:[%s222 + $0xc0] sm:$0xff]
      %v418 = vld [vmem:[%s222 + $0xc8] sm:$0xff]
      %v419 = vld [vmem:[%s222 + $0xd0] sm:$0xff]
      %v420 = vld [vmem:[%s222 + $0xd8] sm:$0xff]
      %v421 = vld [vmem:[%s222 + $0xe0] sm:$0xff]
      %v422 = vld [vmem:[%s222 + $0xe8] sm:$0xff]
      %v423 = vld [vmem:[%s222 + $0xf0] sm:$0xff]
      %v424 = vld [vmem:[%s222 + $0xf8] sm:$0xff]
      %vm425 = vcmask 195584
      %v426 = vsel %vm425, %v393, 0.0
      %427 = vadd.xlane.f32.xlu0 %v426
      %v428 = vpop.xlane.xlu0 %427
      %v429 = vsel %vm425, %v394, 0.0
      %430 = vadd.xlane.f32.xlu0 %v429
      %v431 = vpop.xlane.xlu0 %430
      %v432 = vsel %vm425, %v395, 0.0
      %433 = vadd.xlane.f32.xlu0 %v432
      %v434 = vpop.xlane.xlu0 %433
      %v435 = vsel %vm425, %v396, 0.0
      %436 = vadd.xlane.f32.xlu0 %v435
      %v437 = vpop.xlane.xlu0 %436
      %v438 = vsel %vm425, %v397, 0.0
      %439 = vadd.xlane.f32.xlu0 %v438
      %v440 = vpop.xlane.xlu0 %439
      %v441 = vsel %vm425, %v398, 0.0
      %442 = vadd.xlane.f32.xlu0 %v441
      %v443 = vpop.xlane.xlu0 %442
      %v444 = vsel %vm425, %v399, 0.0
      %445 = vadd.xlane.f32.xlu0 %v444
      %v446 = vpop.xlane.xlu0 %445
      %v447 = vsel %vm425, %v400, 0.0
      %448 = vadd.xlane.f32.xlu0 %v447
      %v449 = vpop.xlane.xlu0 %448
      %v450 = vsel %vm425, %v401, 0.0
      %451 = vadd.xlane.f32.xlu0 %v450
      %v452 = vpop.xlane.xlu0 %451
      %v453 = vsel %vm425, %v402, 0.0
      %454 = vadd.xlane.f32.xlu0 %v453
      %v455 = vpop.xlane.xlu0 %454
      %v456 = vsel %vm425, %v403, 0.0
      %457 = vadd.xlane.f32.xlu0 %v456
      %v458 = vpop.xlane.xlu0 %457
      %v459 = vsel %vm425, %v404, 0.0
      %460 = vadd.xlane.f32.xlu0 %v459
      %v461 = vpop.xlane.xlu0 %460
      %v462 = vsel %vm425, %v405, 0.0
      %463 = vadd.xlane.f32.xlu0 %v462
      %v464 = vpop.xlane.xlu0 %463
      %v465 = vsel %vm425, %v406, 0.0
      %466 = vadd.xlane.f32.xlu0 %v465
      %v467 = vpop.xlane.xlu0 %466
      %v468 = vsel %vm425, %v407, 0.0
      %469 = vadd.xlane.f32.xlu0 %v468
      %v470 = vpop.xlane.xlu0 %469
      %v471 = vsel %vm425, %v408, 0.0
      %472 = vadd.xlane.f32.xlu0 %v471
      %v473 = vpop.xlane.xlu0 %472
      %v474 = vsel %vm425, %v409, 0.0
      %475 = vadd.xlane.f32.xlu0 %v474
      %v476 = vpop.xlane.xlu0 %475
      %v477 = vsel %vm425, %v410, 0.0
      %478 = vadd.xlane.f32.xlu0 %v477
      %v479 = vpop.xlane.xlu0 %478
      %v480 = vsel %vm425, %v411, 0.0
      %481 = vadd.xlane.f32.xlu0 %v480
      %v482 = vpop.xlane.xlu0 %481
      %v483 = vsel %vm425, %v412, 0.0
      %484 = vadd.xlane.f32.xlu0 %v483
      %v485 = vpop.xlane.xlu0 %484
      %v486 = vsel %vm425, %v413, 0.0
      %487 = vadd.xlane.f32.xlu0 %v486
      %v488 = vpop.xlane.xlu0 %487
      %v489 = vsel %vm425, %v414, 0.0
      %490 = vadd.xlane.f32.xlu0 %v489
      %v491 = vpop.xlane.xlu0 %490
      %v492 = vsel %vm425, %v415, 0.0
      %493 = vadd.xlane.f32.xlu0 %v492
      %v494 = vpop.xlane.xlu0 %493
      %v495 = vsel %vm425, %v416, 0.0
      %496 = vadd.xlane.f32.xlu0 %v495
      %v497 = vpop.xlane.xlu0 %496
      %v498 = vsel %vm425, %v417, 0.0
      %499 = vadd.xlane.f32.xlu0 %v498
      %v500 = vpop.xlane.xlu0 %499
      %v501 = vsel %vm425, %v418, 0.0
      %502 = vadd.xlane.f32.xlu0 %v501
      %v503 = vpop.xlane.xlu0 %502
      %v504 = vsel %vm425, %v419, 0.0
      %505 = vadd.xlane.f32.xlu0 %v504
      %v506 = vpop.xlane.xlu0 %505
      %v507 = vsel %vm425, %v420, 0.0
      %508 = vadd.xlane.f32.xlu0 %v507
      %v509 = vpop.xlane.xlu0 %508
      %v510 = vsel %vm425, %v421, 0.0
      %511 = vadd.xlane.f32.xlu0 %v510
      %v512 = vpop.xlane.xlu0 %511
      %v513 = vsel %vm425, %v422, 0.0
      %514 = vadd.xlane.f32.xlu0 %v513
      %v515 = vpop.xlane.xlu0 %514
      %v516 = vsel %vm425, %v423, 0.0
      %517 = vadd.xlane.f32.xlu0 %v516
      %v518 = vpop.xlane.xlu0 %517
      %v519 = vsel %vm425, %v424, 0.0
      %520 = vadd.xlane.f32.xlu0 %v519
      %v521 = vpop.xlane.xlu0 %520
      %v522 = vrcp.pop 24.0
      %v523 = vmul.f32 %v428, %v522
      %v524 = vmul.f32 %v431, %v522
      %v525 = vmul.f32 %v434, %v522
      %v526 = vmul.f32 %v437, %v522
      %v527 = vmul.f32 %v440, %v522
      %v528 = vmul.f32 %v443, %v522
      %v529 = vmul.f32 %v446, %v522
      %v530 = vmul.f32 %v449, %v522
      %v531 = vmul.f32 %v452, %v522
      %v532 = vmul.f32 %v455, %v522
      %v533 = vmul.f32 %v458, %v522
      %v534 = vmul.f32 %v461, %v522
      %v535 = vmul.f32 %v464, %v522
      %v536 = vmul.f32 %v467, %v522
      %v537 = vmul.f32 %v470, %v522
      %v538 = vmul.f32 %v473, %v522
      %v539 = vmul.f32 %v476, %v522
      %v540 = vmul.f32 %v479, %v522
      %v541 = vmul.f32 %v482, %v522
      %v542 = vmul.f32 %v485, %v522
      %v543 = vmul.f32 %v488, %v522
      %v544 = vmul.f32 %v491, %v522
      %v545 = vmul.f32 %v494, %v522
      %v546 = vmul.f32 %v497, %v522
      %v547 = vmul.f32 %v500, %v522
      %v548 = vmul.f32 %v503, %v522
      %v549 = vmul.f32 %v506, %v522
      %v550 = vmul.f32 %v509, %v522
      %v551 = vmul.f32 %v512, %v522
      %v552 = vmul.f32 %v515, %v522
      %v553 = vmul.f32 %v518, %v522
      %v554 = vmul.f32 %v521, %v522
      %v587 = vlaneseq
      %v588 = vand.u32 %v587, 127
      %v589 = vlaneseq
      %v590 = vshrl.u32 %v589, 7
      %v591 = vsub.s32 %v588, %v590
      %v592 = vrot.slane %v361, %v591
      %v593 = vadd.s32 %v588, 4294967288
      %v594 = vlaneseq
      %v595 = vshrl.u32 %v594, 7
      %v596 = vsub.s32 %v593, %v595
      %v597 = vrot.slane %v362, %v596
      %vm598 = vcmask 130112
      %v599 = vsel %vm598, %v597, %v592
      %v600 = vadd.s32 %v588, 4294967280
      %v601 = vlaneseq
      %v602 = vshrl.u32 %v601, 7
      %v603 = vsub.s32 %v600, %v602
      %v604 = vrot.slane %v363, %v603
      %vm605 = vcmask 195712
      %v606 = vsel %vm605, %v604, %v599
      %v607 = vadd.s32 %v588, 4294967272
      %v608 = vlaneseq
      %v609 = vshrl.u32 %v608, 7
      %v610 = vsub.s32 %v607, %v609
      %v611 = vrot.slane %v364, %v610
      %vm612 = vcmask 261312
      %v613 = vsel %vm612, %v611, %v606
      %v614 = vadd.s32 %v588, 4294967264
      %v615 = vlaneseq
      %v616 = vshrl.u32 %v615, 7
      %v617 = vsub.s32 %v614, %v616
      %v618 = vrot.slane %v365, %v617
      %vm619 = vcmask 326912
      %v620 = vsel %vm619, %v618, %v613
      %v621 = vadd.s32 %v588, 4294967256
      %v622 = vlaneseq
      %v623 = vshrl.u32 %v622, 7
      %v624 = vsub.s32 %v621, %v623
      %v625 = vrot.slane %v366, %v624
      %vm626 = vcmask 392512
      %v627 = vsel %vm626, %v625, %v620
      %v628 = vadd.s32 %v588, 4294967248
      %v629 = vlaneseq
      %v630 = vshrl.u32 %v629, 7
      %v631 = vsub.s32 %v628, %v630
      %v632 = vrot.slane %v367, %v631
      %vm633 = vcmask 458112
      %v634 = vsel %vm633, %v632, %v627
      %v635 = vadd.s32 %v588, 4294967240
      %v636 = vlaneseq
      %v637 = vshrl.u32 %v636, 7
      %v638 = vsub.s32 %v635, %v637
      %v639 = vrot.slane %v368, %v638
      %vm640 = vcmask 523712
      %v641 = vsel %vm640, %v639, %v634
      %v642 = vadd.s32 %v588, 4294967232
      %v643 = vlaneseq
      %v644 = vshrl.u32 %v643, 7
      %v645 = vsub.s32 %v642, %v644
      %v646 = vrot.slane %v369, %v645
      %vm647 = vcmask 589312
      %v648 = vsel %vm647, %v646, %v641
      %v649 = vadd.s32 %v588, 4294967224
      %v650 = vlaneseq
      %v651 = vshrl.u32 %v650, 7
      %v652 = vsub.s32 %v649, %v651
      %v653 = vrot.slane %v370, %v652
      %vm654 = vcmask 654912
      %v655 = vsel %vm654, %v653, %v648
      %v656 = vadd.s32 %v588, 4294967216
      %v657 = vlaneseq
      %v658 = vshrl.u32 %v657, 7
      %v659 = vsub.s32 %v656, %v658
      %v660 = vrot.slane %v371, %v659
      %vm661 = vcmask 720512
      %v662 = vsel %vm661, %v660, %v655
      %v663 = vadd.s32 %v588, 4294967208
      %v664 = vlaneseq
      %v665 = vshrl.u32 %v664, 7
      %v666 = vsub.s32 %v663, %v665
      %v667 = vrot.slane %v372, %v666
      %vm668 = vcmask 786112
      %v669 = vsel %vm668, %v667, %v662
      %v670 = vadd.s32 %v588, 4294967200
      %v671 = vlaneseq
      %v672 = vshrl.u32 %v671, 7
      %v673 = vsub.s32 %v670, %v672
      %v674 = vrot.slane %v373, %v673
      %vm675 = vcmask 851712
      %v676 = vsel %vm675, %v674, %v669
      %v677 = vadd.s32 %v588, 4294967192
      %v678 = vlaneseq
      %v679 = vshrl.u32 %v678, 7
      %v680 = vsub.s32 %v677, %v679
      %v681 = vrot.slane %v374, %v680
      %vm682 = vcmask 917312
      %v683 = vsel %vm682, %v681, %v676
      %v684 = vadd.s32 %v588, 4294967184
      %v685 = vlaneseq
      %v686 = vshrl.u32 %v685, 7
      %v687 = vsub.s32 %v684, %v686
      %v688 = vrot.slane %v375, %v687
      %vm689 = vcmask 982912
      %v690 = vsel %vm689, %v688, %v683
      %v691 = vadd.s32 %v588, 4294967176
      %v692 = vlaneseq
      %v693 = vshrl.u32 %v692, 7
      %v694 = vsub.s32 %v691, %v693
      %v695 = vrot.slane %v376, %v694
      %vm696 = vcmask 1048512
      %v697 = vsel %vm696, %v695, %v690
      %v698 = vlaneseq
      %v699 = vshrl.u32 %v698, 7
      %v700 = vsub.s32 %v588, %v699
      %v701 = vrot.slane %v377, %v700
      %v702 = vlaneseq
      %v703 = vshrl.u32 %v702, 7
      %v704 = vsub.s32 %v593, %v703
      %v705 = vrot.slane %v378, %v704
      %v706 = vsel %vm598, %v705, %v701
      %v707 = vlaneseq
      %v708 = vshrl.u32 %v707, 7
      %v709 = vsub.s32 %v600, %v708
      %v710 = vrot.slane %v379, %v709
      %v711 = vsel %vm605, %v710, %v706
      %v712 = vlaneseq
      %v713 = vshrl.u32 %v712, 7
      %v714 = vsub.s32 %v607, %v713
      %v715 = vrot.slane %v380, %v714
      %v716 = vsel %vm612, %v715, %v711
      %v717 = vlaneseq
      %v718 = vshrl.u32 %v717, 7
      %v719 = vsub.s32 %v614, %v718
      %v720 = vrot.slane %v381, %v719
      %v721 = vsel %vm619, %v720, %v716
      %v722 = vlaneseq
      %v723 = vshrl.u32 %v722, 7
      %v724 = vsub.s32 %v621, %v723
      %v725 = vrot.slane %v382, %v724
      %v726 = vsel %vm626, %v725, %v721
      %v727 = vlaneseq
      %v728 = vshrl.u32 %v727, 7
      %v729 = vsub.s32 %v628, %v728
      %v730 = vrot.slane %v383, %v729
      %v731 = vsel %vm633, %v730, %v726
      %v732 = vlaneseq
      %v733 = vshrl.u32 %v732, 7
      %v734 = vsub.s32 %v635, %v733
      %v735 = vrot.slane %v384, %v734
      %v736 = vsel %vm640, %v735, %v731
      %v737 = vlaneseq
      %v738 = vshrl.u32 %v737, 7
      %v739 = vsub.s32 %v642, %v738
      %v740 = vrot.slane %v385, %v739
      %v741 = vsel %vm647, %v740, %v736
      %v742 = vlaneseq
      %v743 = vshrl.u32 %v742, 7
      %v744 = vsub.s32 %v649, %v743
      %v745 = vrot.slane %v386, %v744
      %v746 = vsel %vm654, %v745, %v741
      %v747 = vlaneseq
      %v748 = vshrl.u32 %v747, 7
      %v749 = vsub.s32 %v656, %v748
      %v750 = vrot.slane %v387, %v749
      %v751 = vsel %vm661, %v750, %v746
      %v752 = vlaneseq
      %v753 = vshrl.u32 %v752, 7
      %v754 = vsub.s32 %v663, %v753
      %v755 = vrot.slane %v388, %v754
      %v756 = vsel %vm668, %v755, %v751
      %v757 = vlaneseq
      %v758 = vshrl.u32 %v757, 7
      %v759 = vsub.s32 %v670, %v758
      %v760 = vrot.slane %v389, %v759
      %v761 = vsel %vm675, %v760, %v756
      %v762 = vlaneseq
      %v763 = vshrl.u32 %v762, 7
      %v764 = vsub.s32 %v677, %v763
      %v765 = vrot.slane %v390, %v764
      %v766 = vsel %vm682, %v765, %v761
      %v767 = vlaneseq
      %v768 = vshrl.u32 %v767, 7
      %v769 = vsub.s32 %v684, %v768
      %v770 = vrot.slane %v391, %v769
      %v771 = vsel %vm689, %v770, %v766
      %v772 = vlaneseq
      %v773 = vshrl.u32 %v772, 7
      %v774 = vsub.s32 %v691, %v773
      %v775 = vrot.slane %v392, %v774
      %v776 = vsel %vm696, %v775, %v771
      %vm777 = vcmask 1041409
      %v778 = vsel %vm777, %v776, %v697
      %v812 = vlaneseq
      %v813 = vshrl.u32 %v812, 7
      %v814 = vsub.s32 %v588, %v813
      %v815 = vrot.slane %v523, %v814
      %v816 = vlaneseq
      %v817 = vshrl.u32 %v816, 7
      %v818 = vsub.s32 %v593, %v817
      %v819 = vrot.slane %v524, %v818
      %v820 = vsel %vm598, %v819, %v815
      %v821 = vlaneseq
      %v822 = vshrl.u32 %v821, 7
      %v823 = vsub.s32 %v600, %v822
      %v824 = vrot.slane %v525, %v823
      %v825 = vsel %vm605, %v824, %v820
      %v826 = vlaneseq
      %v827 = vshrl.u32 %v826, 7
      %v828 = vsub.s32 %v607, %v827
      %v829 = vrot.slane %v526, %v828
      %v830 = vsel %vm612, %v829, %v825
      %v831 = vlaneseq
      %v832 = vshrl.u32 %v831, 7
      %v833 = vsub.s32 %v614, %v832
      %v834 = vrot.slane %v527, %v833
      %v835 = vsel %vm619, %v834, %v830
      %v836 = vlaneseq
      %v837 = vshrl.u32 %v836, 7
      %v838 = vsub.s32 %v621, %v837
      %v839 = vrot.slane %v528, %v838
      %v840 = vsel %vm626, %v839, %v835
      %v841 = vlaneseq
      %v842 = vshrl.u32 %v841, 7
      %v843 = vsub.s32 %v628, %v842
      %v844 = vrot.slane %v529, %v843
      %v845 = vsel %vm633, %v844, %v840
      %v846 = vlaneseq
      %v847 = vshrl.u32 %v846, 7
      %v848 = vsub.s32 %v635, %v847
      %v849 = vrot.slane %v530, %v848
      %v850 = vsel %vm640, %v849, %v845
      %v851 = vlaneseq
      %v852 = vshrl.u32 %v851, 7
      %v853 = vsub.s32 %v642, %v852
      %v854 = vrot.slane %v531, %v853
      %v855 = vsel %vm647, %v854, %v850
      %v856 = vlaneseq
      %v857 = vshrl.u32 %v856, 7
      %v858 = vsub.s32 %v649, %v857
      %v859 = vrot.slane %v532, %v858
      %v860 = vsel %vm654, %v859, %v855
      %v861 = vlaneseq
      %v862 = vshrl.u32 %v861, 7
      %v863 = vsub.s32 %v656, %v862
      %v864 = vrot.slane %v533, %v863
      %v865 = vsel %vm661, %v864, %v860
      %v866 = vlaneseq
      %v867 = vshrl.u32 %v866, 7
      %v868 = vsub.s32 %v663, %v867
      %v869 = vrot.slane %v534, %v868
      %v870 = vsel %vm668, %v869, %v865
      %v871 = vlaneseq
      %v872 = vshrl.u32 %v871, 7
      %v873 = vsub.s32 %v670, %v872
      %v874 = vrot.slane %v535, %v873
      %v875 = vsel %vm675, %v874, %v870
      %v876 = vlaneseq
      %v877 = vshrl.u32 %v876, 7
      %v878 = vsub.s32 %v677, %v877
      %v879 = vrot.slane %v536, %v878
      %v880 = vsel %vm682, %v879, %v875
      %v881 = vlaneseq
      %v882 = vshrl.u32 %v881, 7
      %v883 = vsub.s32 %v684, %v882
      %v884 = vrot.slane %v537, %v883
      %v885 = vsel %vm689, %v884, %v880
      %v886 = vlaneseq
      %v887 = vshrl.u32 %v886, 7
      %v888 = vsub.s32 %v691, %v887
      %v889 = vrot.slane %v538, %v888
      %v890 = vsel %vm696, %v889, %v885
      %v891 = vlaneseq
      %v892 = vshrl.u32 %v891, 7
      %v893 = vsub.s32 %v588, %v892
      %v894 = vrot.slane %v539, %v893
      %v895 = vlaneseq
      %v896 = vshrl.u32 %v895, 7
      %v897 = vsub.s32 %v593, %v896
      %v898 = vrot.slane %v540, %v897
      %v899 = vsel %vm598, %v898, %v894
      %v900 = vlaneseq
      %v901 = vshrl.u32 %v900, 7
      %v902 = vsub.s32 %v600, %v901
      %v903 = vrot.slane %v541, %v902
      %v904 = vsel %vm605, %v903, %v899
      %v905 = vlaneseq
      %v906 = vshrl.u32 %v905, 7
      %v907 = vsub.s32 %v607, %v906
      %v908 = vrot.slane %v542, %v907
      %v909 = vsel %vm612, %v908, %v904
      %v910 = vlaneseq
      %v911 = vshrl.u32 %v910, 7
      %v912 = vsub.s32 %v614, %v911
      %v913 = vrot.slane %v543, %v912
      %v914 = vsel %vm619, %v913, %v909
      %v915 = vlaneseq
      %v916 = vshrl.u32 %v915, 7
      %v917 = vsub.s32 %v621, %v916
      %v918 = vrot.slane %v544, %v917
      %v919 = vsel %vm626, %v918, %v914
      %v920 = vlaneseq
      %v921 = vshrl.u32 %v920, 7
      %v922 = vsub.s32 %v628, %v921
      %v923 = vrot.slane %v545, %v922
      %v924 = vsel %vm633, %v923, %v919
      %v925 = vlaneseq
      %v926 = vshrl.u32 %v925, 7
      %v927 = vsub.s32 %v635, %v926
      %v928 = vrot.slane %v546, %v927
      %v929 = vsel %vm640, %v928, %v924
      %v930 = vlaneseq
      %v931 = vshrl.u32 %v930, 7
      %v932 = vsub.s32 %v642, %v931
      %v933 = vrot.slane %v547, %v932
      %v934 = vsel %vm647, %v933, %v929
      %v935 = vlaneseq
      %v936 = vshrl.u32 %v935, 7
      %v937 = vsub.s32 %v649, %v936
      %v938 = vrot.slane %v548, %v937
      %v939 = vsel %vm654, %v938, %v934
      %v940 = vlaneseq
      %v941 = vshrl.u32 %v940, 7
      %v942 = vsub.s32 %v656, %v941
      %v943 = vrot.slane %v549, %v942
      %v944 = vsel %vm661, %v943, %v939
      %v945 = vlaneseq
      %v946 = vshrl.u32 %v945, 7
      %v947 = vsub.s32 %v663, %v946
      %v948 = vrot.slane %v550, %v947
      %v949 = vsel %vm668, %v948, %v944
      %v950 = vlaneseq
      %v951 = vshrl.u32 %v950, 7
      %v952 = vsub.s32 %v670, %v951
      %v953 = vrot.slane %v551, %v952
      %v954 = vsel %vm675, %v953, %v949
      %v955 = vlaneseq
      %v956 = vshrl.u32 %v955, 7
      %v957 = vsub.s32 %v677, %v956
      %v958 = vrot.slane %v552, %v957
      %v959 = vsel %vm682, %v958, %v954
      %v960 = vlaneseq
      %v961 = vshrl.u32 %v960, 7
      %v962 = vsub.s32 %v684, %v961
      %v963 = vrot.slane %v553, %v962
      %v964 = vsel %vm689, %v963, %v959
      %v965 = vlaneseq
      %v966 = vshrl.u32 %v965, 7
      %v967 = vsub.s32 %v691, %v966
      %v968 = vrot.slane %v554, %v967
      %v969 = vsel %vm696, %v968, %v964
      %vm970 = vcmask 1043459
      %v971 = vsel %vm970, %v969, %v890
      %vm973 = vcmask 1041408
      %v974 = vsel %vm973, %v778, %v971
      %v975 = vld [vmem:[%s2] sm:$0xff]
      %v976 = vld [vmem:[%s2 + $0x8] sm:$0xff]
      %977 = vmatprep.subr.mxu0 0.0
      %978 = vmatpush1.xpose.msra.mxu0 %v975
      %979 = vmatprep.subr.mxu0 0.0
      %980 = vmatpush1.xpose.msra.mxu0 %v976
      %981 = vmatprep.subr.mxu0 0.0
      %982 = vmatpush1.xpose.msra.mxu0 0.0
      %983 = vmatprep.subr.mxu0 0.0
      %984 = vmatpush1.xpose.msra.mxu0 0.0
      %985 = vmatprep.subr.mxu0 0.0
      %986 = vmatpush1.xpose.msra.mxu0 0.0
      %987 = vmatprep.subr.mxu0 0.0
      %988 = vmatpush1.xpose.msra.mxu0 0.0
      %989 = vmatprep.subr.mxu0 0.0
      %990 = vmatpush1.xpose.msra.mxu0 0.0
      %991 = vmatprep.subr.mxu0 0.0
      %992 = vmatpush1.xpose.msra.mxu0 0.0
      %993 = vmatprep.subr.mxu0 0.0
      %994 = vmatpush1.xpose.msra.mxu0 0.0
      %995 = vmatprep.subr.mxu0 0.0
      %996 = vmatpush1.xpose.msra.mxu0 0.0
      %997 = vmatprep.subr.mxu0 0.0
      %998 = vmatpush1.xpose.msra.mxu0 0.0
      %999 = vmatprep.subr.mxu0 0.0
      %1000 = vmatpush1.xpose.msra.mxu0 0.0
      %1001 = vmatprep.subr.mxu0 0.0
      %1002 = vmatpush1.xpose.msra.mxu0 0.0
      %1003 = vmatprep.subr.mxu0 0.0
      %1004 = vmatpush1.xpose.msra.mxu0 0.0
      %1005 = vmatprep.subr.mxu0 0.0
      %1006 = vmatpush1.xpose.msra.mxu0 0.0
      %1007 = vmatprep.subr.mxu0 0.0
      %1008 = vmatpush1.xpose.msra.mxu0 0.0
      %1009 = vmatprep.subr.mxu0 0.0
      %1010 = vmatpush1.xpose.msra.mxu0 0.0
      %1011 = vmatprep.subr.mxu0 0.0
      %1012 = vmatpush1.xpose.msra.mxu0 0.0
      %1013 = vmatprep.subr.mxu0 0.0
      %1014 = vmatpush1.xpose.msra.mxu0 0.0
      %1015 = vmatprep.subr.mxu0 0.0
      %1016 = vmatpush1.xpose.msra.mxu0 0.0
      %1017 = vmatprep.subr.mxu0 0.0
      %1018 = vmatpush1.xpose.msra.mxu0 0.0
      %1019 = vmatprep.subr.mxu0 0.0
      %1020 = vmatpush1.xpose.msra.mxu0 0.0
      %1021 = vmatprep.subr.mxu0 0.0
      %1022 = vmatpush1.xpose.msra.mxu0 0.0
      %1023 = vmatprep.subr.mxu0 0.0
      %1024 = vmatpush1.xpose.msra.mxu0 0.0
      %1025 = vmatprep.subr.mxu0 0.0
      %1026 = vmatpush1.xpose.msra.mxu0 0.0
      %1027 = vmatprep.subr.mxu0 0.0
      %1028 = vmatpush1.xpose.msra.mxu0 0.0
      %1029 = vmatprep.subr.mxu0 0.0
      %1030 = vmatpush1.xpose.msra.mxu0 0.0
      %1031 = vmatprep.subr.mxu0 0.0
      %1032 = vmatpush1.xpose.msra.mxu0 0.0
      %1033 = vmatprep.subr.mxu0 0.0
      %1034 = vmatpush1.xpose.msra.mxu0 0.0
      %1035 = vmatprep.subr.mxu0 0.0
      %1036 = vmatpush1.xpose.msra.mxu0 0.0
      %1037 = vmatprep.subr.mxu0 0.0
      %1038 = vmatpush1.xpose.msra.mxu0 0.0
      %1039 = vmatprep.subr.mxu0 0.0
      %1040 = vmatpush1.xpose.msra.mxu0 0.0
      %1041 = vmatprep.mubr.f32.mxu0 0.0
      %1042 = vmatmul.mubr.f32.gmra.mrb[0].mxu0 %v974
      %v1043 = vpop.f32.mrb[0].mxu0
      %v1044 = vadd.f32 0.0, %v1043
      %v1045 = vpop.f32.mrb[0].mxu0
      %1046 = vdwg.mxu0
      %v1047 = vmax.f32 %v1044, 0.0
      %v1048 = vld [vmem:[%s3] sm:$0xff]
      %v1049 = vld [vmem:[%s3 + $0x8] sm:$0xff]
      %v1051 = vsel %vm263, %v1047, 0
      %1053 = vmatprep.subr.mxu0 0.0
      %1054 = vmatpush1.msra.mxu0 %v1048
      %1055 = vmatprep.subr.mxu0 0.0
      %1056 = vmatpush1.msra.mxu0 %v1049
      %1057 = vmatprep.subr.mxu0 0.0
      %1058 = vmatpush1.msra.mxu0 0.0
      %1059 = vmatprep.subr.mxu0 0.0
      %1060 = vmatpush1.msra.mxu0 0.0
      %1061 = vmatprep.subr.mxu0 0.0
      %1062 = vmatpush1.msra.mxu0 0.0
      %1063 = vmatprep.subr.mxu0 0.0
      %1064 = vmatpush1.msra.mxu0 0.0
      %1065 = vmatprep.subr.mxu0 0.0
      %1066 = vmatpush1.msra.mxu0 0.0
      %1067 = vmatprep.subr.mxu0 0.0
      %1068 = vmatpush1.msra.mxu0 0.0
      %1069 = vmatprep.subr.mxu0 0.0
      %1070 = vmatpush1.msra.mxu0 0.0
      %1071 = vmatprep.subr.mxu0 0.0
      %1072 = vmatpush1.msra.mxu0 0.0
      %1073 = vmatprep.subr.mxu0 0.0
      %1074 = vmatpush1.msra.mxu0 0.0
      %1075 = vmatprep.subr.mxu0 0.0
      %1076 = vmatpush1.msra.mxu0 0.0
      %1077 = vmatprep.subr.mxu0 0.0
      %1078 = vmatpush1.msra.mxu0 0.0
      %1079 = vmatprep.subr.mxu0 0.0
      %1080 = vmatpush1.msra.mxu0 0.0
      %1081 = vmatprep.subr.mxu0 0.0
      %1082 = vmatpush1.msra.mxu0 0.0
      %1083 = vmatprep.subr.mxu0 0.0
      %1084 = vmatpush1.msra.mxu0 0.0
      %1085 = vmatprep.subr.mxu0 0.0
      %1086 = vmatpush1.msra.mxu0 0.0
      %1087 = vmatprep.subr.mxu0 0.0
      %1088 = vmatpush1.msra.mxu0 0.0
      %1089 = vmatprep.subr.mxu0 0.0
      %1090 = vmatpush1.msra.mxu0 0.0
      %1091 = vmatprep.subr.mxu0 0.0
      %1092 = vmatpush1.msra.mxu0 0.0
      %1093 = vmatprep.subr.mxu0 0.0
      %1094 = vmatpush1.msra.mxu0 0.0
      %1095 = vmatprep.subr.mxu0 0.0
      %1096 = vmatpush1.msra.mxu0 0.0
      %1097 = vmatprep.subr.mxu0 0.0
      %1098 = vmatpush1.msra.mxu0 0.0
      %1099 = vmatprep.subr.mxu0 0.0
      %1100 = vmatpush1.msra.mxu0 0.0
      %1101 = vmatprep.subr.mxu0 0.0
      %1102 = vmatpush1.msra.mxu0 0.0
      %1103 = vmatprep.subr.mxu0 0.0
      %1104 = vmatpush1.msra.mxu0 0.0
      %1105 = vmatprep.subr.mxu0 0.0
      %1106 = vmatpush1.msra.mxu0 0.0
      %1107 = vmatprep.subr.mxu0 0.0
      %1108 = vmatpush1.msra.mxu0 0.0
      %1109 = vmatprep.subr.mxu0 0.0
      %1110 = vmatpush1.msra.mxu0 0.0
      %1111 = vmatprep.subr.mxu0 0.0
      %1112 = vmatpush1.msra.mxu0 0.0
      %1113 = vmatprep.subr.mxu0 0.0
      %1114 = vmatpush1.msra.mxu0 0.0
      %1115 = vmatprep.subr.mxu0 0.0
      %1116 = vmatpush1.msra.mxu0 0.0
      %1117 = vmatprep.mubr.f32.mxu0 0.0
      %1118 = vmatmul.mubr.f32.gmra.mrb[0].mxu0 %v1051
      %v1119 = vpop.f32.mrb[0].mxu0
      %v1120 = vadd.f32 0.0, %v1119
      %v1121 = vpop.f32.mrb[0].mxu0
      %1122 = vdwg.mxu0
      %v1124 = vrot.slane %v1120, 2
      %v1126 = vadd.f32 %v1120, %v1124
      %v1127 = vmul.f32 %v1126, 0.5
      %v1128 = vtanh.pop %v1127
      %v1129 = vadd.f32 %v1128, 1.0
      %v1130 = vmul.f32 %v1129, 0.5
      %v1131 = vlaneseq
      %v1132 = vshrl.u32 %v1131, 7
      %v1133 = vsub.s32 0, %v1132
      %v1134 = vrot.slane %v1130, %v1133
      %1136 = vbcast.lane.b32.xlu0 %v1134, 256
      %v1137 = vpop.permute.xlu0 %1136
      %s1139 = sor.u32 256, 8
      %1140 = vbcast.lane.b32.xlu0 %v1134, %s1139
      %v1141 = vpop.permute.xlu0 %1140
      %s1143 = sor.u32 256, 16
      %1144 = vbcast.lane.b32.xlu0 %v1134, %s1143
      %v1145 = vpop.permute.xlu0 %1144
      %s1147 = sor.u32 256, 24
      %1148 = vbcast.lane.b32.xlu0 %v1134, %s1147
      %v1149 = vpop.permute.xlu0 %1148
      %s1151 = sor.u32 256, 32
      %1152 = vbcast.lane.b32.xlu0 %v1134, %s1151
      %v1153 = vpop.permute.xlu0 %1152
      %s1155 = sor.u32 256, 40
      %1156 = vbcast.lane.b32.xlu0 %v1134, %s1155
      %v1157 = vpop.permute.xlu0 %1156
      %s1159 = sor.u32 256, 48
      %1160 = vbcast.lane.b32.xlu0 %v1134, %s1159
      %v1161 = vpop.permute.xlu0 %1160
      %s1163 = sor.u32 256, 56
      %1164 = vbcast.lane.b32.xlu0 %v1134, %s1163
      %v1165 = vpop.permute.xlu0 %1164
      %s1167 = sor.u32 256, 64
      %1168 = vbcast.lane.b32.xlu0 %v1134, %s1167
      %v1169 = vpop.permute.xlu0 %1168
      %s1171 = sor.u32 256, 72
      %1172 = vbcast.lane.b32.xlu0 %v1134, %s1171
      %v1173 = vpop.permute.xlu0 %1172
      %s1175 = sor.u32 256, 80
      %1176 = vbcast.lane.b32.xlu0 %v1134, %s1175
      %v1177 = vpop.permute.xlu0 %1176
      %s1179 = sor.u32 256, 88
      %1180 = vbcast.lane.b32.xlu0 %v1134, %s1179
      %v1181 = vpop.permute.xlu0 %1180
      %s1183 = sor.u32 256, 96
      %1184 = vbcast.lane.b32.xlu0 %v1134, %s1183
      %v1185 = vpop.permute.xlu0 %1184
      %s1187 = sor.u32 256, 104
      %1188 = vbcast.lane.b32.xlu0 %v1134, %s1187
      %v1189 = vpop.permute.xlu0 %1188
      %s1191 = sor.u32 256, 112
      %1192 = vbcast.lane.b32.xlu0 %v1134, %s1191
      %v1193 = vpop.permute.xlu0 %1192
      %s1195 = sor.u32 256, 120
      %1196 = vbcast.lane.b32.xlu0 %v1134, %s1195
      %v1197 = vpop.permute.xlu0 %1196
      %v1198 = vlaneseq
      %v1199 = vshrl.u32 %v1198, 7
      %v1200 = vsub.s32 1, %v1199
      %v1201 = vrot.slane %v1130, %v1200
      %1203 = vbcast.lane.b32.xlu0 %v1201, 256
      %v1204 = vpop.permute.xlu0 %1203
      %s1206 = sor.u32 256, 8
      %1207 = vbcast.lane.b32.xlu0 %v1201, %s1206
      %v1208 = vpop.permute.xlu0 %1207
      %s1210 = sor.u32 256, 16
      %1211 = vbcast.lane.b32.xlu0 %v1201, %s1210
      %v1212 = vpop.permute.xlu0 %1211
      %s1214 = sor.u32 256, 24
      %1215 = vbcast.lane.b32.xlu0 %v1201, %s1214
      %v1216 = vpop.permute.xlu0 %1215
      %s1218 = sor.u32 256, 32
      %1219 = vbcast.lane.b32.xlu0 %v1201, %s1218
      %v1220 = vpop.permute.xlu0 %1219
      %s1222 = sor.u32 256, 40
      %1223 = vbcast.lane.b32.xlu0 %v1201, %s1222
      %v1224 = vpop.permute.xlu0 %1223
      %s1226 = sor.u32 256, 48
      %1227 = vbcast.lane.b32.xlu0 %v1201, %s1226
      %v1228 = vpop.permute.xlu0 %1227
      %s1230 = sor.u32 256, 56
      %1231 = vbcast.lane.b32.xlu0 %v1201, %s1230
      %v1232 = vpop.permute.xlu0 %1231
      %s1234 = sor.u32 256, 64
      %1235 = vbcast.lane.b32.xlu0 %v1201, %s1234
      %v1236 = vpop.permute.xlu0 %1235
      %s1238 = sor.u32 256, 72
      %1239 = vbcast.lane.b32.xlu0 %v1201, %s1238
      %v1240 = vpop.permute.xlu0 %1239
      %s1242 = sor.u32 256, 80
      %1243 = vbcast.lane.b32.xlu0 %v1201, %s1242
      %v1244 = vpop.permute.xlu0 %1243
      %s1246 = sor.u32 256, 88
      %1247 = vbcast.lane.b32.xlu0 %v1201, %s1246
      %v1248 = vpop.permute.xlu0 %1247
      %s1250 = sor.u32 256, 96
      %1251 = vbcast.lane.b32.xlu0 %v1201, %s1250
      %v1252 = vpop.permute.xlu0 %1251
      %s1254 = sor.u32 256, 104
      %1255 = vbcast.lane.b32.xlu0 %v1201, %s1254
      %v1256 = vpop.permute.xlu0 %1255
      %s1258 = sor.u32 256, 112
      %1259 = vbcast.lane.b32.xlu0 %v1201, %s1258
      %v1260 = vpop.permute.xlu0 %1259
      %s1262 = sor.u32 256, 120
      %1263 = vbcast.lane.b32.xlu0 %v1201, %s1262
      %v1264 = vpop.permute.xlu0 %1263
      %v1265 = vmul.f32 %v231, %v1137
      %v1266 = vmul.f32 %v232, %v1141
      %v1267 = vmul.f32 %v233, %v1145
      %v1268 = vmul.f32 %v234, %v1149
      %v1269 = vmul.f32 %v235, %v1153
      %v1270 = vmul.f32 %v236, %v1157
      %v1271 = vmul.f32 %v237, %v1161
      %v1272 = vmul.f32 %v238, %v1165
      %v1273 = vmul.f32 %v239, %v1169
      %v1274 = vmul.f32 %v240, %v1173
      %v1275 = vmul.f32 %v241, %v1177
      %v1276 = vmul.f32 %v242, %v1181
      %v1277 = vmul.f32 %v243, %v1185
      %v1278 = vmul.f32 %v244, %v1189
      %v1279 = vmul.f32 %v245, %v1193
      %v1280 = vmul.f32 %v246, %v1197
      %v1281 = vmul.f32 %v247, %v1204
      %v1282 = vmul.f32 %v248, %v1208
      %v1283 = vmul.f32 %v249, %v1212
      %v1284 = vmul.f32 %v250, %v1216
      %v1285 = vmul.f32 %v251, %v1220
      %v1286 = vmul.f32 %v252, %v1224
      %v1287 = vmul.f32 %v253, %v1228
      %v1288 = vmul.f32 %v254, %v1232
      %v1289 = vmul.f32 %v255, %v1236
      %v1290 = vmul.f32 %v256, %v1240
      %v1291 = vmul.f32 %v257, %v1244
      %v1292 = vmul.f32 %v258, %v1248
      %v1293 = vmul.f32 %v259, %v1252
      %v1294 = vmul.f32 %v260, %v1256
      %v1295 = vmul.f32 %v261, %v1260
      %v1296 = vmul.f32 %v262, %v1264
      %1297 = vst.msk [vmem:[%s229] sm:$0xff] %vm263, %v1265
      %1298 = vst.msk [vmem:[%s229 + $0x8] sm:$0xff] %vm263, %v1266
      %1299 = vst.msk [vmem:[%s229 + $0x10] sm:$0xff] %vm263, %v1267
      %1300 = vst.msk [vmem:[%s229 + $0x18] sm:$0xff] %vm263, %v1268
      %1301 = vst.msk [vmem:[%s229 + $0x20] sm:$0xff] %vm263, %v1269
      %1302 = vst.msk [vmem:[%s229 + $0x28] sm:$0xff] %vm263, %v1270
      %1303 = vst.msk [vmem:[%s229 + $0x30] sm:$0xff] %vm263, %v1271
      %1304 = vst.msk [vmem:[%s229 + $0x38] sm:$0xff] %vm263, %v1272
      %1305 = vst.msk [vmem:[%s229 + $0x40] sm:$0xff] %vm263, %v1273
      %1306 = vst.msk [vmem:[%s229 + $0x48] sm:$0xff] %vm263, %v1274
      %1307 = vst.msk [vmem:[%s229 + $0x50] sm:$0xff] %vm263, %v1275
      %1308 = vst.msk [vmem:[%s229 + $0x58] sm:$0xff] %vm263, %v1276
      %1309 = vst.msk [vmem:[%s229 + $0x60] sm:$0xff] %vm263, %v1277
      %1310 = vst.msk [vmem:[%s229 + $0x68] sm:$0xff] %vm263, %v1278
      %1311 = vst.msk [vmem:[%s229 + $0x70] sm:$0xff] %vm263, %v1279
      %1312 = vst.msk [vmem:[%s229 + $0x78] sm:$0xff] %vm263, %v1280
      %1313 = vst.msk [vmem:[%s229 + $0x80] sm:$0xff] %vm263, %v1281
      %1314 = vst.msk [vmem:[%s229 + $0x88] sm:$0xff] %vm263, %v1282
      %1315 = vst.msk [vmem:[%s229 + $0x90] sm:$0xff] %vm263, %v1283
      %1316 = vst.msk [vmem:[%s229 + $0x98] sm:$0xff] %vm263, %v1284
      %1317 = vst.msk [vmem:[%s229 + $0xa0] sm:$0xff] %vm263, %v1285
      %1318 = vst.msk [vmem:[%s229 + $0xa8] sm:$0xff] %vm263, %v1286
      %1319 = vst.msk [vmem:[%s229 + $0xb0] sm:$0xff] %vm263, %v1287
      %1320 = vst.msk [vmem:[%s229 + $0xb8] sm:$0xff] %vm263, %v1288
      %1321 = vst.msk [vmem:[%s229 + $0xc0] sm:$0xff] %vm263, %v1289
      %1322 = vst.msk [vmem:[%s229 + $0xc8] sm:$0xff] %vm263, %v1290
      %1323 = vst.msk [vmem:[%s229 + $0xd0] sm:$0xff] %vm263, %v1291
      %1324 = vst.msk [vmem:[%s229 + $0xd8] sm:$0xff] %vm263, %v1292
      %1325 = vst.msk [vmem:[%s229 + $0xe0] sm:$0xff] %vm263, %v1293
      %1326 = vst.msk [vmem:[%s229 + $0xe8] sm:$0xff] %vm263, %v1294
      %1327 = vst.msk [vmem:[%s229 + $0xf0] sm:$0xff] %vm263, %v1295
      %1328 = vst.msk [vmem:[%s229 + $0xf8] sm:$0xff] %vm263, %v1296
      %s1329 = smul.u32 2, %s15
      %p1330 = scmp.lt.s32.totalorder %s1329, 3
      %s1331 = scalar_select %p1330, %s1329, 3
      %s1332 = smul.addr %s1331, 16
      %s1333 = smul.addr %s1332, 8
      %s1334 = scalar_lea.vmem %s4, %s1333
      // Predicated region
      $region37: #{tpu_custom_call.1} parent=35 // pred_check
        %p1335 = pneg %p127
      $region38: #{tpu_custom_call.1} parent=35 // pred_check_branch
        %1337 = sbr.rel (%p1335) target = $region40
      $region39: #{tpu_custom_call.1} parent=35 // pred_region
        %s1338 = smul.u32 2, %s15
      $region40: #{tpu_custom_call.1} parent=35 // pred_fallthru
        _
    $region36: #{tpu_custom_call.1} parent=5 // pred_fallthru
      _
    %p1339 = scmp.le.s32.totalorder 2, %s10
    // Predicated region
    $region41: #{tpu_custom_call.1} parent=5 // pred_check
      %p1340 = pneg %p1339
    $region42: #{tpu_custom_call.1} parent=5 // pred_check_branch
      %1342 = sbr.rel (%p1340) target = $region44
    $region43: #{tpu_custom_call.1} parent=5 // pred_region
      %s1343 = ssub.s32 %s10, 2
      // Predicated region
      $region45: #{tpu_custom_call.1} parent=43 // pred_check
        %p1344 = pneg %p133
      $region46: #{tpu_custom_call.1} parent=43 // pred_check_branch
        %1346 = sbr.rel (%p1344) target = $region48
      $region47: #{tpu_custom_call.1} parent=43 // pred_region
        %s1347 = smul.u32 2, %s16
        %p1348 = scmp.lt.s32.totalorder %s1347, 3
        %s1349 = scalar_select %p1348, %s1347, 3
        %s1350 = smul.addr %s1349, 16
        %s1351 = smul.addr %s1350, 8
        %s1352 = scalar_lea.vmem %s4, %s1351
      $region48: #{tpu_custom_call.1} parent=43 // pred_fallthru
        _
    $region44: #{tpu_custom_call.1} parent=5 // pred_fallthru
      _
  $region6: #{tpu_custom_call.1} parent=0 // loop_footer
    %s14 = sadd.s32 1, %s10
  $region7: #{tpu_custom_call.1} parent=0 // loop_footer_branch
    %9 = sbr.rel target = $region3
  $region8: #{tpu_custom_call.1} parent=0 // loop_exit
    _

</llo_original>
